<compile_context>
chip_gen: v7x
topology: tpu7x:2x2x1
jax: 0.10.0
libtpu: 0.0.40
codegen_flags: <defaults>
</compile_context>

<pallas_src>
import jax
import jax.numpy as jnp
from jax import lax
from jax.experimental import pallas as pl
from jax.experimental.pallas import tpu as pltpu

TAU = 32.0


def memory_network_kernel(feat_ref, w_ref, mem_ref, seg_ref, out_ref):
    B = feat_ref.shape[0]
    E = w_ref.shape[1] // 2

    f = feat_ref[...]                                           # (B, D) f32
    # norm(x): divide each row by its L2 length (rsqrt -> EUP slot; eps only
    # guards an all-zero row, which would be NaN in the original torch code).
    inv_len = lax.rsqrt(jnp.sum(f * f, axis=1, keepdims=True) + 1e-24)
    f = f * inv_len

    # Fused projections: one (B,D)@(D,2E) MXU op.  Host packed the RHS as
    # [tau * topic_fc.weight^T | domain_fc.weight^T].
    proj = jnp.dot(f, w_ref[...], preferred_element_type=jnp.float32)    # (B, 2E)
    t_tau = proj[:, :E]                                         # tau * topic_fc(f)
    d = proj[:, E:]                                             # domain_fc(f)

    # One memory matmul for both halves: (2B, E) @ (E, K*M).
    td = jnp.concatenate([t_tau, d], axis=0)                    # (2B, E)
    td_mm = jnp.dot(td, mem_ref[...], preferred_element_type=jnp.float32)  # (2B, KM)
    logits = td_mm[:B, :]                                       # tau * <topic_fc(f), mem[k,m]>
    dmem = td_mm[B:, :]                                         # <domain_fc(f), mem[k,m]>

    # Segmented softmax over memory slots (per domain) in flat lane layout.
    # A per-row global max is a valid stabilizing shift for every segment.
    row_max = jnp.max(logits, axis=-1, keepdims=True)           # (B, 1)
    e = jnp.exp(logits - row_max)                               # (B, KM)
    seg = seg_ref[...]                                          # (KM, K) one-hot segments
    seg_sum = jnp.dot(e, seg, preferred_element_type=jnp.float32)        # (B, K)
    # scores[b,k] = sum_m softmax(logits)[b,k,m] * dmem[b,k,m]
    num = jnp.dot(e * dmem, seg, preferred_element_type=jnp.float32)     # (B, K)
    scores = (num / seg_sum) * TAU                              # (B, K)

    # Softmax over domains.
    s_max = jnp.max(scores, axis=-1, keepdims=True)
    es = jnp.exp(scores - s_max)
    out_ref[...] = es / jnp.sum(es, axis=-1, keepdims=True)     # (B, K)


def prepare_params(topic_w, domain_w, domain_memory):
    """One-time host-side parameter re-layout (free at inference time).

    topic_w/domain_w: PyTorch Linear layout (emb_dim, input_dim).
    domain_memory:    stacked dict -> (domain_num, memory_num, emb_dim).
    """
    E, _D = topic_w.shape
    K, M, _ = domain_memory.shape
    KM = K * M
    # Fused projection RHS: (D, 2E); tau folded into the topic half (exact: 32 = 2^5).
    w_cat = jnp.concatenate([TAU * topic_w.T, domain_w.T], axis=1)
    # Memory as (E, K*M): column k*M + m is domain_memory[k, m, :].
    mem_em = jnp.transpose(domain_memory.reshape(KM, E))
    # One-hot segment matrix (K*M, K) for the per-domain softmax sums.
    seg = (jnp.arange(KM)[:, None] // M == jnp.arange(K)[None, :]).astype(jnp.float32)
    return w_cat, mem_em, seg


def memory_network_forward(feature, category, w_cat, mem_em, seg):
    """feature: (B, D). Returns domain_att of shape (B, 1, domain_num)."""
    del category  # accepted for interface parity; unused in the torch forward too.
    B, _D = feature.shape
    K = seg.shape[1]

    vmem = pl.BlockSpec(memory_space=pltpu.MemorySpace.VMEM)
    out = pl.pallas_call(
        memory_network_kernel,
        out_shape=jax.ShapeDtypeStruct((B, K), jnp.float32),
        in_specs=[vmem, vmem, vmem, vmem],
        out_specs=vmem,
    )(feature, w_cat, mem_em, seg)

    # torch: .unsqueeze(1) -> (B, 1, domain_num)
    return out[:, None, :]


def _reference(feature, topic_w, domain_w, domain_memory):
    f = feature / jnp.sqrt(jnp.sum(feature ** 2, axis=1, keepdims=True))
    t = f @ topic_w.T
    d = f @ domain_w.T
    logits = jnp.einsum("be,kme->bkm", t, domain_memory) * TAU
    att = jax.nn.softmax(logits, axis=-1)
    emb = jnp.einsum("bkm,kme->bke", att, domain_memory)
    scores = jnp.einsum("bke,be->bk", emb, d)
    return jax.nn.softmax(scores * TAU, axis=-1)[:, None, :]


if __name__ == "__main__":
    # Small, forward-consistent shapes.
    B = 8            # batch
    input_dim = 32
    emb_dim = 32
    domain_num = 3
    memory_num = 10

    key = jax.random.PRNGKey(0)
    k1, k2, k3, k4, k5 = jax.random.split(key, 5)

    feature = jax.random.normal(k1, (B, input_dim), dtype=jnp.float32)
    # category is unsqueezed but never used in forward(); keep for interface parity.
    category = jax.random.randint(k5, (B,), 0, domain_num)

    # Deterministic synthetic parameters (PyTorch Linear weight layout: (out, in)).
    topic_w = jax.random.normal(k2, (emb_dim, input_dim), dtype=jnp.float32) * 0.1
    domain_w = jax.random.normal(k3, (emb_dim, input_dim), dtype=jnp.float32) * 0.1
    # domain_memory dict -> stacked tensor (domain_num, memory_num, emb_dim).
    domain_memory = jax.random.normal(
        k4, (domain_num, memory_num, emb_dim), dtype=jnp.float32) * 0.1

    w_cat, mem_em, seg = prepare_params(topic_w, domain_w, domain_memory)

    out = memory_network_forward(feature, category, w_cat, mem_em, seg)
    out = jax.block_until_ready(out)

    ref = _reference(feature, topic_w, domain_w, domain_memory)
    assert out.shape == (B, 1, domain_num)
    # Algebraic re-association (att·(d·mem) instead of (att·mem)·d) changes
    # rounding at ~1e-6 on the softmax outputs, so compare at 1e-4.
    assert jnp.allclose(out, ref, atol=1e-4, rtol=1e-4)

    print("KERNEL_OK")
</pallas_src>

<mosaic_0001>
module attributes {stable_mosaic.version = 11 : i64} {
  func.func @memory_network_kernel(%arg0: memref<8x32xf32, #tpu.memory_space<vmem>>, %arg1: memref<32x64xf32, #tpu.memory_space<vmem>>, %arg2: memref<32x30xf32, #tpu.memory_space<vmem>>, %arg3: memref<30x3xf32, #tpu.memory_space<vmem>>, %arg4: memref<8x3xf32, #tpu.memory_space<vmem>>) attributes {dimension_semantics = [], scalar_prefetch = 0 : i64, scratch_operands = 0 : i64, tpu.core_type = #tpu.core_type<tc>} {
    %c0 = arith.constant 0 : index
    %c0_0 = arith.constant 0 : index
    %0 = vector.load %arg0[%c0, %c0_0] : memref<8x32xf32, #tpu.memory_space<vmem>>, vector<8x32xf32>
    %1 = arith.mulf %0, %0 : vector<8x32xf32>
    %cst = arith.constant dense<0.000000e+00> : vector<8xf32>
    %2 = vector.multi_reduction <add>, %1, %cst [1] : vector<8x32xf32> to vector<8xf32>
    %3 = vector.shape_cast %2 : vector<8xf32> to vector<8x1xf32>
    %cst_1 = arith.constant 1.000000e-24 : f32
    %4 = vector.broadcast %cst_1 : f32 to vector<8x1xf32>
    %5 = arith.addf %3, %4 : vector<8x1xf32>
    %6 = math.rsqrt %5 : vector<8x1xf32>
    %7 = vector.broadcast %6 : vector<8x1xf32> to vector<8x32xf32>
    %8 = arith.mulf %0, %7 : vector<8x32xf32>
    %c0_2 = arith.constant 0 : index
    %c0_3 = arith.constant 0 : index
    %9 = vector.load %arg1[%c0_2, %c0_3] : memref<32x64xf32, #tpu.memory_space<vmem>>, vector<32x64xf32>
    %cst_4 = arith.constant dense<0.000000e+00> : vector<8x64xf32>
    %10 = tpu.matmul %8, %9, %cst_4 {dimension_numbers = #tpu.dot_dimension_numbers<[1], [0], [0], [1], [0, 0, 1, 1], [], []>} : vector<8x32xf32>, vector<32x64xf32>, vector<8x64xf32> -> vector<8x64xf32>
    %11 = vector.extract_strided_slice %10 {offsets = [0, 0], sizes = [8, 32], strides = [1, 1]} : vector<8x64xf32> to vector<8x32xf32>
    %12 = vector.extract_strided_slice %10 {offsets = [0, 32], sizes = [8, 32], strides = [1, 1]} : vector<8x64xf32> to vector<8x32xf32>
    %13 = tpu.concatenate %11, %12 in 0 : vector<8x32xf32>, vector<8x32xf32> -> vector<16x32xf32>
    %c0_5 = arith.constant 0 : index
    %c0_6 = arith.constant 0 : index
    %14 = vector.load %arg2[%c0_5, %c0_6] : memref<32x30xf32, #tpu.memory_space<vmem>>, vector<32x30xf32>
    %cst_7 = arith.constant dense<0.000000e+00> : vector<16x30xf32>
    %15 = tpu.matmul %13, %14, %cst_7 {dimension_numbers = #tpu.dot_dimension_numbers<[1], [0], [0], [1], [0, 0, 1, 1], [], []>} : vector<16x32xf32>, vector<32x30xf32>, vector<16x30xf32> -> vector<16x30xf32>
    %16 = vector.extract_strided_slice %15 {offsets = [0, 0], sizes = [8, 30], strides = [1, 1]} : vector<16x30xf32> to vector<8x30xf32>
    %17 = vector.extract_strided_slice %15 {offsets = [8, 0], sizes = [8, 30], strides = [1, 1]} : vector<16x30xf32> to vector<8x30xf32>
    %cst_8 = arith.constant dense<0xFF800000> : vector<8xf32>
    %18 = vector.multi_reduction <maximumf>, %16, %cst_8 [1] : vector<8x30xf32> to vector<8xf32>
    %19 = vector.shape_cast %18 : vector<8xf32> to vector<8x1xf32>
    %20 = vector.broadcast %19 : vector<8x1xf32> to vector<8x30xf32>
    %21 = arith.subf %16, %20 : vector<8x30xf32>
    %22 = math.exp %21 : vector<8x30xf32>
    %c0_9 = arith.constant 0 : index
    %c0_10 = arith.constant 0 : index
    %23 = vector.load %arg3[%c0_9, %c0_10] : memref<30x3xf32, #tpu.memory_space<vmem>>, vector<30x3xf32>
    %cst_11 = arith.constant dense<0.000000e+00> : vector<8x3xf32>
    %24 = tpu.matmul %22, %23, %cst_11 {dimension_numbers = #tpu.dot_dimension_numbers<[1], [0], [0], [1], [0, 0, 1, 1], [], []>} : vector<8x30xf32>, vector<30x3xf32>, vector<8x3xf32> -> vector<8x3xf32>
    %25 = arith.mulf %22, %17 : vector<8x30xf32>
    %cst_12 = arith.constant dense<0.000000e+00> : vector<8x3xf32>
    %26 = tpu.matmul %25, %23, %cst_12 {dimension_numbers = #tpu.dot_dimension_numbers<[1], [0], [0], [1], [0, 0, 1, 1], [], []>} : vector<8x30xf32>, vector<30x3xf32>, vector<8x3xf32> -> vector<8x3xf32>
    %27 = arith.divf %26, %24 : vector<8x3xf32>
    %cst_13 = arith.constant 3.200000e+01 : f32
    %28 = vector.broadcast %cst_13 : f32 to vector<8x3xf32>
    %29 = arith.mulf %27, %28 : vector<8x3xf32>
    %cst_14 = arith.constant dense<0xFF800000> : vector<8xf32>
    %30 = vector.multi_reduction <maximumf>, %29, %cst_14 [1] : vector<8x3xf32> to vector<8xf32>
    %31 = vector.shape_cast %30 : vector<8xf32> to vector<8x1xf32>
    %32 = vector.broadcast %31 : vector<8x1xf32> to vector<8x3xf32>
    %33 = arith.subf %29, %32 : vector<8x3xf32>
    %34 = math.exp %33 : vector<8x3xf32>
    %cst_15 = arith.constant dense<0.000000e+00> : vector<8xf32>
    %35 = vector.multi_reduction <add>, %34, %cst_15 [1] : vector<8x3xf32> to vector<8xf32>
    %36 = vector.shape_cast %35 : vector<8xf32> to vector<8x1xf32>
    %37 = vector.broadcast %36 : vector<8x1xf32> to vector<8x3xf32>
    %38 = arith.divf %34, %37 : vector<8x3xf32>
    %c0_16 = arith.constant 0 : index
    %c0_17 = arith.constant 0 : index
    %39 = vector.load %arg4[%c0_16, %c0_17] : memref<8x3xf32, #tpu.memory_space<vmem>>, vector<8x3xf32>
    tpu.vector_store %arg4[%c0_16, %c0_17], %38 {strides = array<i32>} : memref<8x3xf32, #tpu.memory_space<vmem>>, vector<8x3xf32>,
    return
  }
}

</mosaic_0001>

<llo_original>
// kernel: tpu_custom_call.1
$region0: #{tpu_custom_call.1}
  #allocation0 [shape = 'u32[]', space=smem, size = 0x4, offset = 0x4, fixed_abs, tag = 'smem constant byte address 0x4 - core index']
  #allocation1 [shape = 'u32[144,128]{1,0:T(1,128)}', space=vmem, size = 0x12000, scoped, tag = 'internal scratch']
  %s0 = inlined_call_operand.hbm [shape: f32[8,32], index: 0, kind: input, shape index: {}]
  %s1 = inlined_call_operand.vmem [shape: f32[32,64], index: 1, kind: input, shape index: {}]
  %s2 = inlined_call_operand.hbm [shape: f32[32,30], index: 2, kind: input, shape index: {}]
  %s3 = inlined_call_operand.vmem [shape: f32[30,3], index: 3, kind: input, shape index: {}]
  %s4 = inlined_call_operand.vmem [shape: f32[8,3], index: 4, kind: output, shape index: {}]
  %s5 = sld [smem:[#allocation0]]
  $region34: #{tpu_custom_call.1} parent=0
    _
  %s7 = ssub.s32 1, %s5
  %s8 = scalar_select 0, %s7, %s5
  $region1: #{tpu_custom_call.1} parent=0
    #allocation2 [shape = 'u8[4096]{0}', space=vmem, size = 0x1000, scoped, tag = 'input window, operand 0, single buffered']
    #allocation3 [shape = 's32[1]{0}', space=sflag, size = 0x4, scoped, tag = 'scoped memory for tpu_custom_call.1']
    #allocation4 [shape = 'u8[16384]{0}', space=vmem, size = 0x4000, scoped, tag = 'input window, operand 2, single buffered']
    #allocation5 [shape = 's32[1]{0}', space=sflag, size = 0x4, scoped, tag = 'scoped memory for tpu_custom_call.1']
    %9 = vsyncpa [#allocation3], 0
    %10 = vsyncpa [#allocation5], 0
    // Predicated region
    $region2: #{tpu_custom_call.1} parent=1 // pred_check
      _
    $region3: #{tpu_custom_call.1} parent=1 // pred_check_branch
      %12 = sbr.rel (0) target = $region5
    $region4: #{tpu_custom_call.1} parent=1 // pred_region
      %s14 = ssub.s32 128, 128
      %15 = vsyncadd [#allocation3], %s14
      %s17 = sshll.u32 [#allocation2], 4
      %s18 = int_to_ptr.vmem [resolvable:$true] %s17
      %20 = dma.hbm_to_vmem [thread:$0]  %s0, 128, %s18, [#allocation3]
    $region5: #{tpu_custom_call.1} parent=1 // pred_fallthru
      _
    // Predicated region
    $region6: #{tpu_custom_call.1} parent=1 // pred_check
      _
    $region7: #{tpu_custom_call.1} parent=1 // pred_check_branch
      %22 = sbr.rel (0) target = $region9
    $region8: #{tpu_custom_call.1} parent=1 // pred_region
      _
    $region9: #{tpu_custom_call.1} parent=1 // pred_fallthru
      _
    // Predicated region
    $region10: #{tpu_custom_call.1} parent=1 // pred_check
      _
    $region11: #{tpu_custom_call.1} parent=1 // pred_check_branch
      %24 = sbr.rel (0) target = $region13
    $region12: #{tpu_custom_call.1} parent=1 // pred_region
      %s26 = ssub.s32 512, 512
      %27 = vsyncadd [#allocation5], %s26
      %s28 = sshll.u32 [#allocation4], 4
      %s29 = int_to_ptr.vmem [resolvable:$true] %s28
      %34 = dma.hbm_to_vmem [thread:$0]  %s2, 512, %s29, [#allocation5], 128, 128, 8
    $region13: #{tpu_custom_call.1} parent=1 // pred_fallthru
      _
    // Predicated region
    $region14: #{tpu_custom_call.1} parent=1 // pred_check
      _
    $region15: #{tpu_custom_call.1} parent=1 // pred_check_branch
      %36 = sbr.rel (0) target = $region17
    $region16: #{tpu_custom_call.1} parent=1 // pred_region
      _
    $region17: #{tpu_custom_call.1} parent=1 // pred_fallthru
      _
    // Predicated region
    $region18: #{tpu_custom_call.1} parent=1 // pred_check
      _
    $region19: #{tpu_custom_call.1} parent=1 // pred_check_branch
      %38 = sbr.rel (0) target = $region21
    $region20: #{tpu_custom_call.1} parent=1 // pred_region
      %39 = dma.done [#allocation3], 128
    $region21: #{tpu_custom_call.1} parent=1 // pred_fallthru
      _
    // Predicated region
    $region22: #{tpu_custom_call.1} parent=1 // pred_check
      _
    $region23: #{tpu_custom_call.1} parent=1 // pred_check_branch
      %41 = sbr.rel (0) target = $region25
    $region24: #{tpu_custom_call.1} parent=1 // pred_region
      %42 = dma.done [#allocation5], 512
    $region25: #{tpu_custom_call.1} parent=1 // pred_fallthru
      _
    %v43 = vld [vmem:[#allocation2] sm:$0xff]
    %v44 = vmul.f32 %v43, %v43
    %vm45 = vcmask 261120
    %v46 = vsel %vm45, %v44, 0.0
    %47 = vadd.xlane.f32.xlu0 %v46
    %v48 = vpop.xlane.xlu0 %47
    %v49 = vadd.f32 %v48, 1e-24
    %v50 = vrsqrt.pop %v49
    %v51 = vmul.f32 %v43, %v50
    %v52 = vld [vmem:[%s1] sm:$0xff]
    %v53 = vld [vmem:[%s1 + $0x8] sm:$0xff]
    %v54 = vld [vmem:[%s1 + $0x10] sm:$0xff]
    %v55 = vld [vmem:[%s1 + $0x18] sm:$0xff]
    %v57 = vsel %vm45, %v51, 0
    %59 = vmatprep.subr.mxu0 0.0
    %60 = vmatpush1.msra.mxu0 %v52
    %61 = vmatprep.subr.mxu0 0.0
    %62 = vmatpush1.msra.mxu0 %v53
    %63 = vmatprep.subr.mxu0 0.0
    %64 = vmatpush1.msra.mxu0 %v54
    %65 = vmatprep.subr.mxu0 0.0
    %66 = vmatpush1.msra.mxu0 %v55
    %67 = vmatprep.subr.mxu0 0.0
    %68 = vmatpush1.msra.mxu0 0.0
    %69 = vmatprep.subr.mxu0 0.0
    %70 = vmatpush1.msra.mxu0 0.0
    %71 = vmatprep.subr.mxu0 0.0
    %72 = vmatpush1.msra.mxu0 0.0
    %73 = vmatprep.subr.mxu0 0.0
    %74 = vmatpush1.msra.mxu0 0.0
    %75 = vmatprep.subr.mxu0 0.0
    %76 = vmatpush1.msra.mxu0 0.0
    %77 = vmatprep.subr.mxu0 0.0
    %78 = vmatpush1.msra.mxu0 0.0
    %79 = vmatprep.subr.mxu0 0.0
    %80 = vmatpush1.msra.mxu0 0.0
    %81 = vmatprep.subr.mxu0 0.0
    %82 = vmatpush1.msra.mxu0 0.0
    %83 = vmatprep.subr.mxu0 0.0
    %84 = vmatpush1.msra.mxu0 0.0
    %85 = vmatprep.subr.mxu0 0.0
    %86 = vmatpush1.msra.mxu0 0.0
    %87 = vmatprep.subr.mxu0 0.0
    %88 = vmatpush1.msra.mxu0 0.0
    %89 = vmatprep.subr.mxu0 0.0
    %90 = vmatpush1.msra.mxu0 0.0
    %91 = vmatprep.subr.mxu0 0.0
    %92 = vmatpush1.msra.mxu0 0.0
    %93 = vmatprep.subr.mxu0 0.0
    %94 = vmatpush1.msra.mxu0 0.0
    %95 = vmatprep.subr.mxu0 0.0
    %96 = vmatpush1.msra.mxu0 0.0
    %97 = vmatprep.subr.mxu0 0.0
    %98 = vmatpush1.msra.mxu0 0.0
    %99 = vmatprep.subr.mxu0 0.0
    %100 = vmatpush1.msra.mxu0 0.0
    %101 = vmatprep.subr.mxu0 0.0
    %102 = vmatpush1.msra.mxu0 0.0
    %103 = vmatprep.subr.mxu0 0.0
    %104 = vmatpush1.msra.mxu0 0.0
    %105 = vmatprep.subr.mxu0 0.0
    %106 = vmatpush1.msra.mxu0 0.0
    %107 = vmatprep.subr.mxu0 0.0
    %108 = vmatpush1.msra.mxu0 0.0
    %109 = vmatprep.subr.mxu0 0.0
    %110 = vmatpush1.msra.mxu0 0.0
    %111 = vmatprep.subr.mxu0 0.0
    %112 = vmatpush1.msra.mxu0 0.0
    %113 = vmatprep.subr.mxu0 0.0
    %114 = vmatpush1.msra.mxu0 0.0
    %115 = vmatprep.subr.mxu0 0.0
    %116 = vmatpush1.msra.mxu0 0.0
    %117 = vmatprep.subr.mxu0 0.0
    %118 = vmatpush1.msra.mxu0 0.0
    %119 = vmatprep.subr.mxu0 0.0
    %120 = vmatpush1.msra.mxu0 0.0
    %121 = vmatprep.subr.mxu0 0.0
    %122 = vmatpush1.msra.mxu0 0.0
    %123 = vmatprep.mubr.f32.mxu0 0.0
    %124 = vmatmul.mubr.f32.gmra.mrb[0].mxu0 %v57
    %v125 = vpop.f32.mrb[0].mxu0
    %v126 = vadd.f32 0.0, %v125
    %v127 = vpop.f32.mrb[0].mxu0
    %128 = vdwg.mxu0
    %130 = vrot.lane.b32.xlu0 %v126, 96
    %v131 = vpop.permute.xlu0 %130
    %v132 = vld [vmem:[#allocation4] sm:$0xff]
    %v133 = vld [vmem:[#allocation4 + $0x8] sm:$0xff]
    %v134 = vld [vmem:[#allocation4 + $0x10] sm:$0xff]
    %v135 = vld [vmem:[#allocation4 + $0x18] sm:$0xff]
    %v136 = vsel %vm45, %v126, 0
    %v138 = vsel %vm45, %v131, 0
    %140 = vmatprep.subr.mxu0 0.0
    %141 = vmatpush1.msra.mxu0 %v132
    %142 = vmatprep.subr.mxu0 0.0
    %143 = vmatpush1.msra.mxu0 %v133
    %144 = vmatprep.subr.mxu0 0.0
    %145 = vmatpush1.msra.mxu0 %v134
    %146 = vmatprep.subr.mxu0 0.0
    %147 = vmatpush1.msra.mxu0 %v135
    %148 = vmatprep.subr.mxu0 0.0
    %149 = vmatpush1.msra.mxu0 0.0
    %150 = vmatprep.subr.mxu0 0.0
    %151 = vmatpush1.msra.mxu0 0.0
    %152 = vmatprep.subr.mxu0 0.0
    %153 = vmatpush1.msra.mxu0 0.0
    %154 = vmatprep.subr.mxu0 0.0
    %155 = vmatpush1.msra.mxu0 0.0
    %156 = vmatprep.subr.mxu0 0.0
    %157 = vmatpush1.msra.mxu0 0.0
    %158 = vmatprep.subr.mxu0 0.0
    %159 = vmatpush1.msra.mxu0 0.0
    %160 = vmatprep.subr.mxu0 0.0
    %161 = vmatpush1.msra.mxu0 0.0
    %162 = vmatprep.subr.mxu0 0.0
    %163 = vmatpush1.msra.mxu0 0.0
    %164 = vmatprep.subr.mxu0 0.0
    %165 = vmatpush1.msra.mxu0 0.0
    %166 = vmatprep.subr.mxu0 0.0
    %167 = vmatpush1.msra.mxu0 0.0
    %168 = vmatprep.subr.mxu0 0.0
    %169 = vmatpush1.msra.mxu0 0.0
    %170 = vmatprep.subr.mxu0 0.0
    %171 = vmatpush1.msra.mxu0 0.0
    %172 = vmatprep.subr.mxu0 0.0
    %173 = vmatpush1.msra.mxu0 0.0
    %174 = vmatprep.subr.mxu0 0.0
    %175 = vmatpush1.msra.mxu0 0.0
    %176 = vmatprep.subr.mxu0 0.0
    %177 = vmatpush1.msra.mxu0 0.0
    %178 = vmatprep.subr.mxu0 0.0
    %179 = vmatpush1.msra.mxu0 0.0
    %180 = vmatprep.subr.mxu0 0.0
    %181 = vmatpush1.msra.mxu0 0.0
    %182 = vmatprep.subr.mxu0 0.0
    %183 = vmatpush1.msra.mxu0 0.0
    %184 = vmatprep.subr.mxu0 0.0
    %185 = vmatpush1.msra.mxu0 0.0
    %186 = vmatprep.subr.mxu0 0.0
    %187 = vmatpush1.msra.mxu0 0.0
    %188 = vmatprep.subr.mxu0 0.0
    %189 = vmatpush1.msra.mxu0 0.0
    %190 = vmatprep.subr.mxu0 0.0
    %191 = vmatpush1.msra.mxu0 0.0
    %192 = vmatprep.subr.mxu0 0.0
    %193 = vmatpush1.msra.mxu0 0.0
    %194 = vmatprep.subr.mxu0 0.0
    %195 = vmatpush1.msra.mxu0 0.0
    %196 = vmatprep.subr.mxu0 0.0
    %197 = vmatpush1.msra.mxu0 0.0
    %198 = vmatprep.subr.mxu0 0.0
    %199 = vmatpush1.msra.mxu0 0.0
    %200 = vmatprep.subr.mxu0 0.0
    %201 = vmatpush1.msra.mxu0 0.0
    %202 = vmatprep.subr.mxu0 0.0
    %203 = vmatpush1.msra.mxu0 0.0
    %204 = vmatprep.mubr.f32.mxu0 0.0
    %205 = vmatmul.mubr.f32.gmra.mrb[0].mxu0 %v136
    %v206 = vpop.f32.mrb[0].mxu0
    %v207 = vadd.f32 0.0, %v206
    %v208 = vpop.f32.mrb[0].mxu0
    %209 = vmatprep.mubr.f32.mxu0 0.0
    %210 = vmatmul.mubr.f32.gmra.mrb[0].mxu0 %v138
    %v211 = vpop.f32.mrb[0].mxu0
    %v212 = vadd.f32 0.0, %v211
    %v213 = vpop.f32.mrb[0].mxu0
    %214 = vdwg.mxu0
    %vm215 = vcmask 244736
    %v216 = vsel %vm215, %v207, -inf
    %217 = vmax.xlane.f32.xlu0 %v216
    %v218 = vpop.xlane.xlu0 %217
    %v219 = vsub.f32 %v207, %v218
    %v220 = vmul.f32 %v219, 1.442695
    %v221 = vpow.pop %v220
    %v222 = vld [vmem:[%s3] sm:$0xff]
    %v223 = vld [vmem:[%s3 + $0x8] sm:$0xff]
    %v224 = vld [vmem:[%s3 + $0x10] sm:$0xff]
    %v225 = vld [vmem:[%s3 + $0x18] sm:$0x3f]
    %v227 = vsel %vm215, %v221, 0
    %vm229 = vcmask 1045504
    %v231 = vsel %vm229, %v225, 0
    %233 = vmatprep.subr.mxu0 0.0
    %234 = vmatpush1.msra.mxu0 %v222
    %235 = vmatprep.subr.mxu0 0.0
    %236 = vmatpush1.msra.mxu0 %v223
    %237 = vmatprep.subr.mxu0 0.0
    %238 = vmatpush1.msra.mxu0 %v224
    %239 = vmatprep.subr.mxu0 0.0
    %240 = vmatpush1.msra.mxu0 %v231
    %241 = vmatprep.subr.mxu0 0.0
    %242 = vmatpush1.msra.mxu0 0.0
    %243 = vmatprep.subr.mxu0 0.0
    %244 = vmatpush1.msra.mxu0 0.0
    %245 = vmatprep.subr.mxu0 0.0
    %246 = vmatpush1.msra.mxu0 0.0
    %247 = vmatprep.subr.mxu0 0.0
    %248 = vmatpush1.msra.mxu0 0.0
    %249 = vmatprep.subr.mxu0 0.0
    %250 = vmatpush1.msra.mxu0 0.0
    %251 = vmatprep.subr.mxu0 0.0
    %252 = vmatpush1.msra.mxu0 0.0
    %253 = vmatprep.subr.mxu0 0.0
    %254 = vmatpush1.msra.mxu0 0.0
    %255 = vmatprep.subr.mxu0 0.0
    %256 = vmatpush1.msra.mxu0 0.0
    %257 = vmatprep.subr.mxu0 0.0
    %258 = vmatpush1.msra.mxu0 0.0
    %259 = vmatprep.subr.mxu0 0.0
    %260 = vmatpush1.msra.mxu0 0.0
    %261 = vmatprep.subr.mxu0 0.0
    %262 = vmatpush1.msra.mxu0 0.0
    %263 = vmatprep.subr.mxu0 0.0
    %264 = vmatpush1.msra.mxu0 0.0
    %265 = vmatprep.subr.mxu0 0.0
    %266 = vmatpush1.msra.mxu0 0.0
    %267 = vmatprep.subr.mxu0 0.0
    %268 = vmatpush1.msra.mxu0 0.0
    %269 = vmatprep.subr.mxu0 0.0
    %270 = vmatpush1.msra.mxu0 0.0
    %271 = vmatprep.subr.mxu0 0.0
    %272 = vmatpush1.msra.mxu0 0.0
    %273 = vmatprep.subr.mxu0 0.0
    %274 = vmatpush1.msra.mxu0 0.0
    %275 = vmatprep.subr.mxu0 0.0
    %276 = vmatpush1.msra.mxu0 0.0
    %277 = vmatprep.subr.mxu0 0.0
    %278 = vmatpush1.msra.mxu0 0.0
    %279 = vmatprep.subr.mxu0 0.0
    %280 = vmatpush1.msra.mxu0 0.0
    %281 = vmatprep.subr.mxu0 0.0
    %282 = vmatpush1.msra.mxu0 0.0
    %283 = vmatprep.subr.mxu0 0.0
    %284 = vmatpush1.msra.mxu0 0.0
    %285 = vmatprep.subr.mxu0 0.0
    %286 = vmatpush1.msra.mxu0 0.0
    %287 = vmatprep.subr.mxu0 0.0
    %288 = vmatpush1.msra.mxu0 0.0
    %289 = vmatprep.subr.mxu0 0.0
    %290 = vmatpush1.msra.mxu0 0.0
    %291 = vmatprep.subr.mxu0 0.0
    %292 = vmatpush1.msra.mxu0 0.0
    %293 = vmatprep.subr.mxu0 0.0
    %294 = vmatpush1.msra.mxu0 0.0
    %295 = vmatprep.subr.mxu0 0.0
    %296 = vmatpush1.msra.mxu0 0.0
    %297 = vmatprep.mubr.f32.mxu0 0.0
    %298 = vmatmul.mubr.f32.gmra.mrb[0].mxu0 %v227
    %v299 = vpop.f32.mrb[0].mxu0
    %v300 = vadd.f32 0.0, %v299
    %v301 = vpop.f32.mrb[0].mxu0
    %302 = vdwg.mxu0
    %v303 = vmul.f32 %v221, %v212
    %v305 = vsel %vm215, %v303, 0
    %307 = vmatprep.subr.mxu0 0.0
    %308 = vmatpush1.msra.mxu0 %v222
    %309 = vmatprep.subr.mxu0 0.0
    %310 = vmatpush1.msra.mxu0 %v223
    %311 = vmatprep.subr.mxu0 0.0
    %312 = vmatpush1.msra.mxu0 %v224
    %313 = vmatprep.subr.mxu0 0.0
    %314 = vmatpush1.msra.mxu0 %v231
    %315 = vmatprep.subr.mxu0 0.0
    %316 = vmatpush1.msra.mxu0 0.0
    %317 = vmatprep.subr.mxu0 0.0
    %318 = vmatpush1.msra.mxu0 0.0
    %319 = vmatprep.subr.mxu0 0.0
    %320 = vmatpush1.msra.mxu0 0.0
    %321 = vmatprep.subr.mxu0 0.0
    %322 = vmatpush1.msra.mxu0 0.0
    %323 = vmatprep.subr.mxu0 0.0
    %324 = vmatpush1.msra.mxu0 0.0
    %325 = vmatprep.subr.mxu0 0.0
    %326 = vmatpush1.msra.mxu0 0.0
    %327 = vmatprep.subr.mxu0 0.0
    %328 = vmatpush1.msra.mxu0 0.0
    %329 = vmatprep.subr.mxu0 0.0
    %330 = vmatpush1.msra.mxu0 0.0
    %331 = vmatprep.subr.mxu0 0.0
    %332 = vmatpush1.msra.mxu0 0.0
    %333 = vmatprep.subr.mxu0 0.0
    %334 = vmatpush1.msra.mxu0 0.0
    %335 = vmatprep.subr.mxu0 0.0
    %336 = vmatpush1.msra.mxu0 0.0
    %337 = vmatprep.subr.mxu0 0.0
    %338 = vmatpush1.msra.mxu0 0.0
    %339 = vmatprep.subr.mxu0 0.0
    %340 = vmatpush1.msra.mxu0 0.0
    %341 = vmatprep.subr.mxu0 0.0
    %342 = vmatpush1.msra.mxu0 0.0
    %343 = vmatprep.subr.mxu0 0.0
    %344 = vmatpush1.msra.mxu0 0.0
    %345 = vmatprep.subr.mxu0 0.0
    %346 = vmatpush1.msra.mxu0 0.0
    %347 = vmatprep.subr.mxu0 0.0
    %348 = vmatpush1.msra.mxu0 0.0
    %349 = vmatprep.subr.mxu0 0.0
    %350 = vmatpush1.msra.mxu0 0.0
    %351 = vmatprep.subr.mxu0 0.0
    %352 = vmatpush1.msra.mxu0 0.0
    %353 = vmatprep.subr.mxu0 0.0
    %354 = vmatpush1.msra.mxu0 0.0
    %355 = vmatprep.subr.mxu0 0.0
    %356 = vmatpush1.msra.mxu0 0.0
    %357 = vmatprep.subr.mxu0 0.0
    %358 = vmatpush1.msra.mxu0 0.0
    %359 = vmatprep.subr.mxu0 0.0
    %360 = vmatpush1.msra.mxu0 0.0
    %361 = vmatprep.subr.mxu0 0.0
    %362 = vmatpush1.msra.mxu0 0.0
    %363 = vmatprep.subr.mxu0 0.0
    %364 = vmatpush1.msra.mxu0 0.0
    %365 = vmatprep.subr.mxu0 0.0
    %366 = vmatpush1.msra.mxu0 0.0
    %367 = vmatprep.subr.mxu0 0.0
    %368 = vmatpush1.msra.mxu0 0.0
    %369 = vmatprep.subr.mxu0 0.0
    %370 = vmatpush1.msra.mxu0 0.0
    %371 = vmatprep.mubr.f32.mxu0 0.0
    %372 = vmatmul.mubr.f32.gmra.mrb[0].mxu0 %v305
    %v373 = vpop.f32.mrb[0].mxu0
    %v374 = vadd.f32 0.0, %v373
    %v375 = vpop.f32.mrb[0].mxu0
    %376 = vdwg.mxu0
    %v377 = vrcp.pop %v300
    %v378 = vmul.f32 %v374, %v377
    %v379 = vmul.f32 %v378, 32.0
    %vm380 = vcmask 23552
    %v381 = vsel %vm380, %v379, -inf
    %382 = vmax.xlane.f32.xlu0 %v381
    %v383 = vpop.xlane.xlu0 %382
    %v384 = vsub.f32 %v379, %v383
    %v385 = vmul.f32 %v384, 1.442695
    %v386 = vpow.pop %v385
    %v387 = vsel %vm380, %v386, 0.0
    %388 = vadd.xlane.f32.xlu0 %v387
    %v389 = vpop.xlane.xlu0 %388
    %v390 = vrcp.pop %v389
    %v391 = vmul.f32 %v386, %v390
    %392 = vst.msk [vmem:[%s4] sm:$0xff] %vm380, %v391
    // Predicated region
    $region26: #{tpu_custom_call.1} parent=1 // pred_check
      _
    $region27: #{tpu_custom_call.1} parent=1 // pred_check_branch
      %394 = sbr.rel (0) target = $region29
    $region28: #{tpu_custom_call.1} parent=1 // pred_region
      _
    $region29: #{tpu_custom_call.1} parent=1 // pred_fallthru
      _
    // Predicated region
    $region30: #{tpu_custom_call.1} parent=1 // pred_check
      _
    $region31: #{tpu_custom_call.1} parent=1 // pred_check_branch
      %396 = sbr.rel (0) target = $region33
    $region32: #{tpu_custom_call.1} parent=1 // pred_region
      _
    $region33: #{tpu_custom_call.1} parent=1 // pred_fallthru
      _
    %397 = vsyncpa [#allocation3], 1
    %398 = vsyncpa [#allocation5], 1

</llo_original>
